<compile_context>
chip_gen: v7x
topology: tpu7x:2x2x1
jax: 0.10.0
libtpu: 0.0.40
codegen_flags: <defaults>
</compile_context>

<pallas_src>
import functools

import jax
import jax.numpy as jnp
from jax import lax
from jax.experimental import pallas as pl
from jax.experimental.pallas import tpu as pltpu


def _round_up(x, m):
    return ((x + m - 1) // m) * m


def _device_budgets():
    """(double-buffered logits stream budget, vmem_limit_bytes) per TPU generation."""
    try:
        kind = jax.devices()[0].device_kind.lower()
    except Exception:
        kind = ""
    if "v7" in kind:                         # 64 MiB VMEM per TensorCore
        return 24 << 20, 48 << 20
    if "v6" in kind:                         # 128 MiB physical VMEM
        return 32 << 20, 96 << 20
    if "v5 lite" in kind or "v5e" in kind or "v5lite" in kind:
        return 24 << 20, 64 << 20            # 128 MiB physical, low default scoped limit
    return 8 << 20, None                     # unknown: stay inside default scoped VMEM


def _ls_ce_kernel(logits_ref, target_ref, out_ref,
                  m_ref, l_ref, s_ref, t_ref,
                  *, classes, on_value, off_value, needs_class_mask):
    """Grid = (batch_tiles, class_tiles); class axis is the streaming reduction."""
    c = pl.program_id(1)
    nc = pl.num_programs(1)

    # --- init accumulators at the first class tile of each batch tile ---
    @pl.when(c == 0)
    def _():
        m_ref[...] = jnp.full_like(m_ref, -jnp.inf)   # running max
        l_ref[...] = jnp.zeros_like(l_ref)            # running sum exp(x - m)
        s_ref[...] = jnp.zeros_like(s_ref)            # running sum_c x
        t_ref[...] = jnp.zeros_like(t_ref)            # logit at the target class

    x = logits_ref[...].astype(jnp.float32)           # (TB, TC), native dtype streamed
    TB, TC = x.shape

    # Local column index; compare against per-tile shifted scalars instead of
    # building a global column index (saves a full-tile VALU add).
    iota = lax.broadcasted_iota(jnp.int32, (TB, TC), 1)
    tgt_local = target_ref[...] - c * TC              # (TB, 1)

    # Target-logit accumulation: tgt_local only ever hits in-range columns, so
    # this needs no validity mask on any tile.
    is_tgt = iota == tgt_local
    t_ref[...] = t_ref[...] + jnp.sum(jnp.where(is_tgt, x, 0.0),
                                      axis=-1, keepdims=True)

    def _accumulate(x_max, x_sum):
        # Online logsumexp + running logit sum.
        m_old = m_ref[...]
        m_new = jnp.maximum(m_old, jnp.max(x_max, axis=-1, keepdims=True))
        e = jnp.exp(x_max - m_new)
        l_ref[...] = (l_ref[...] * jnp.exp(m_old - m_new)
                      + jnp.sum(e, axis=-1, keepdims=True))
        m_ref[...] = m_new
        s_ref[...] = s_ref[...] + jnp.sum(x_sum, axis=-1, keepdims=True)

    if needs_class_mask:
        # Only the last class tile contains out-of-range (garbage) columns; all
        # other tiles take the select-free path.
        @pl.when(c == nc - 1)
        def _():
            valid = iota < (classes - c * TC)
            _accumulate(jnp.where(valid, x, -jnp.inf), jnp.where(valid, x, 0.0))

        @pl.when(c != nc - 1)
        def _():
            _accumulate(x, x)
    else:
        _accumulate(x, x)

    # --- finalize: closed-form per-row loss ---
    @pl.when(c == nc - 1)
    def _():
        # NOTE: s_ref accumulates the raw logit sum in f32; for extremely large C
        # with large-magnitude logits this can lose a few ULPs vs summing log-probs.
        lse = m_ref[...] + jnp.log(l_ref[...])                          # (TB, 1)
        sum_logp = s_ref[...] - jnp.float32(classes) * lse              # sum_c log p
        logp_t = t_ref[...] - lse                                       # log p[target]
        per_row = -(jnp.float32(off_value) * sum_logp
                    + jnp.float32(on_value - off_value) * logp_t)
        out_ref[...] = per_row.astype(out_ref.dtype)


def cross_entropy_loss_mod(logits, target, *, classes, smoothing=0.1,
                           batch_tile=None, class_tile=None):
    """logits: (B, C) float; target: (B,) int -> scalar float32 loss."""
    B, C = logits.shape
    assert C == classes

    itemsize = jnp.dtype(logits.dtype).itemsize
    sub = {4: 8, 2: 16, 1: 32}.get(itemsize, 8)        # sublane packing per dtype

    stream_budget, vmem_limit = _device_budgets()

    # ---- batch tile: multiple of the sublane packing; split into >=2 blocks
    #      whenever B allows so the "parallel" axis can feed both v7x cores.
    tb_cap = batch_tile if batch_tile is not None else 256
    tb_cap = max(sub, (int(tb_cap) // sub) * sub)
    tb_nat = _round_up(pl.cdiv(B, 2), sub) if B > sub else _round_up(B, sub)
    tb = min(tb_cap, tb_nat, _round_up(B, sub))
    nb = pl.cdiv(B, tb)

    # ---- class tile: lane-dense (multiple of 128), sized so the double-buffered
    #      logits stream stays inside the per-generation VMEM budget.  When the
    #      whole row fits, nc == 1 and the streaming reduction collapses.
    tc_cap = class_tile if class_tile is not None else (1 << 30)
    tc_cap = max(128, (int(tc_cap) // 128) * 128)
    tc_budget = max(128, (stream_budget // (2 * tb * itemsize)) // 128 * 128)
    tc = min(_round_up(C, 128), tc_budget, tc_cap)
    nc = pl.cdiv(C, tc)

    # Logits are streamed straight from HBM with NO padded copy; only the tiny
    # target vector (and the per-row loss output) are padded to full batch tiles.
    B_pad = nb * tb
    target_p = jnp.zeros((B_pad, 1), jnp.int32).at[:B, 0].set(target.astype(jnp.int32))

    on_value = 1.0 - float(smoothing)
    off_value = float(smoothing) / (classes - 1)

    kernel = functools.partial(
        _ls_ce_kernel,
        classes=int(classes),
        on_value=on_value,
        off_value=off_value,
        needs_class_mask=(C % tc != 0),
    )

    per_row = pl.pallas_call(
        kernel,
        out_shape=jax.ShapeDtypeStruct((B_pad, 1), jnp.float32),
        grid=(nb, nc),
        in_specs=[
            pl.BlockSpec((tb, tc), lambda b, c: (b, c)),   # streamed logits tiles
            pl.BlockSpec((tb, 1), lambda b, c: (b, 0)),    # resident targets column
        ],
        out_specs=pl.BlockSpec((tb, 1), lambda b, c: (b, 0)),  # resident per-row loss
        scratch_shapes=[pltpu.VMEM((tb, 1), jnp.float32)] * 4,
        compiler_params=pltpu.CompilerParams(
            dimension_semantics=("parallel", "arbitrary"),
            vmem_limit_bytes=vmem_limit,
        ),
    )(logits, target_p)

    # Tiny O(B) mean done outside the kernel (keeps the batch axis parallel).
    return jnp.mean(per_row[:B, 0])


def _reference_loss(logits, target, classes, smoothing):
    # Pure-JAX reference mirroring the PyTorch forward.
    logp = jax.nn.log_softmax(logits.astype(jnp.float32), axis=-1)
    onehot = jnp.full((logits.shape[0], classes), smoothing / (classes - 1),
                      dtype=jnp.float32)
    onehot = onehot.at[jnp.arange(logits.shape[0]), target].set(1.0 - smoothing)
    return jnp.mean(jnp.sum(-onehot * logp, axis=-1))


if __name__ == "__main__":
    smoothing = 0.1
    key = jax.random.PRNGKey(0)
    k1, k2, k3, k4, k5, k6 = jax.random.split(key, 6)

    # Case 1: small shapes matching the module spec (single tile, masked cols).
    B, C = 8, 32
    logits = jax.random.normal(k1, (B, C), dtype=jnp.float32)
    target = jax.random.randint(k2, (B,), 0, C, dtype=jnp.int32)
    loss = cross_entropy_loss_mod(logits, target, classes=C, smoothing=smoothing)
    loss = jax.block_until_ready(loss)
    ref = _reference_loss(logits, target, C, smoothing)
    assert jnp.allclose(loss, ref, atol=1e-4, rtol=1e-5), (loss, ref)

    # Case 2: multi-tile batch + multi-tile class streaming with ragged edge
    # tiles in BOTH dims (no padded logits copy; last class tile masked).
    B2, C2 = 20, 300
    logits2 = jax.random.normal(k3, (B2, C2), dtype=jnp.float32)
    target2 = jax.random.randint(k4, (B2,), 0, C2, dtype=jnp.int32)
    loss2 = cross_entropy_loss_mod(logits2, target2, classes=C2,
                                   smoothing=smoothing,
                                   batch_tile=8, class_tile=128)
    loss2 = jax.block_until_ready(loss2)
    ref2 = _reference_loss(logits2, target2, C2, smoothing)
    assert jnp.allclose(loss2, ref2, atol=1e-4, rtol=1e-5), (loss2, ref2)

    # Case 3: bf16 logits streamed in native dtype (halves HBM traffic),
    # ragged last class tile, f32 accumulation inside the kernel.
    B3, C3 = 12, 200
    logits3 = jax.random.normal(k5, (B3, C3), dtype=jnp.float32).astype(jnp.bfloat16)
    target3 = jax.random.randint(k6, (B3,), 0, C3, dtype=jnp.int32)
    loss3 = cross_entropy_loss_mod(logits3, target3, classes=C3,
                                   smoothing=smoothing, class_tile=128)
    loss3 = jax.block_until_ready(loss3)
    ref3 = _reference_loss(logits3, target3, C3, smoothing)
    assert jnp.allclose(loss3, ref3, atol=1e-2, rtol=1e-3), (loss3, ref3)

    print("KERNEL_OK")
</pallas_src>

<mosaic_0001>
module attributes {stable_mosaic.version = 11 : i64} {
  func.func @_ls_ce_kernel(%arg0: i32, %arg1: i32, %arg2: memref<8x128xf32, #tpu.memory_space<vmem>>, %arg3: memref<8x1xi32, #tpu.memory_space<vmem>>, %arg4: memref<8x1xf32, #tpu.memory_space<vmem>>, %arg5: memref<8x1xf32, #tpu.memory_space<vmem>>, %arg6: memref<8x1xf32, #tpu.memory_space<vmem>>, %arg7: memref<8x1xf32, #tpu.memory_space<vmem>>, %arg8: memref<8x1xf32, #tpu.memory_space<vmem>>) attributes {dimension_semantics = [#tpu.dimension_semantics<parallel>, #tpu.dimension_semantics<arbitrary>], iteration_bounds = array<i64: 1, 1>, scalar_prefetch = 0 : i64, scratch_operands = 4 : i64, tpu.core_type = #tpu.core_type<tc>, window_params = [{transform_indices = @transform_0, window_bounds = array<i64: 8, 128>}, {transform_indices = @transform_1, window_bounds = array<i64: 8, 1>}, {transform_indices = @transform_2, window_bounds = array<i64: 8, 1>}]} {
    %c0_i32 = arith.constant 0 : i32
    %0 = arith.cmpi eq, %arg1, %c0_i32 : i32
    %1 = arith.extui %0 : i1 to i32
    %c0_i32_0 = arith.constant 0 : i32
    %2 = arith.cmpi ne, %1, %c0_i32_0 : i32
    scf.if %2 {
      %cst_15 = arith.constant 0xFF800000 : f32
      %27 = vector.broadcast %cst_15 : f32 to vector<8x1xf32>
      %c0_16 = arith.constant 0 : index
      %c0_17 = arith.constant 0 : index
      %28 = vector.load %arg5[%c0_16, %c0_17] : memref<8x1xf32, #tpu.memory_space<vmem>>, vector<8x1xf32>
      tpu.vector_store %arg5[%c0_16, %c0_17], %27 {strides = array<i32>} : memref<8x1xf32, #tpu.memory_space<vmem>>, vector<8x1xf32>,
      %cst_18 = arith.constant 0.000000e+00 : f32
      %29 = vector.broadcast %cst_18 : f32 to vector<8x1xf32>
      %c0_19 = arith.constant 0 : index
      %c0_20 = arith.constant 0 : index
      %30 = vector.load %arg6[%c0_19, %c0_20] : memref<8x1xf32, #tpu.memory_space<vmem>>, vector<8x1xf32>
      tpu.vector_store %arg6[%c0_19, %c0_20], %29 {strides = array<i32>} : memref<8x1xf32, #tpu.memory_space<vmem>>, vector<8x1xf32>,
      %cst_21 = arith.constant 0.000000e+00 : f32
      %31 = vector.broadcast %cst_21 : f32 to vector<8x1xf32>
      %c0_22 = arith.constant 0 : index
      %c0_23 = arith.constant 0 : index
      %32 = vector.load %arg7[%c0_22, %c0_23] : memref<8x1xf32, #tpu.memory_space<vmem>>, vector<8x1xf32>
      tpu.vector_store %arg7[%c0_22, %c0_23], %31 {strides = array<i32>} : memref<8x1xf32, #tpu.memory_space<vmem>>, vector<8x1xf32>,
      %cst_24 = arith.constant 0.000000e+00 : f32
      %33 = vector.broadcast %cst_24 : f32 to vector<8x1xf32>
      %c0_25 = arith.constant 0 : index
      %c0_26 = arith.constant 0 : index
      %34 = vector.load %arg8[%c0_25, %c0_26] : memref<8x1xf32, #tpu.memory_space<vmem>>, vector<8x1xf32>
      tpu.vector_store %arg8[%c0_25, %c0_26], %33 {strides = array<i32>} : memref<8x1xf32, #tpu.memory_space<vmem>>, vector<8x1xf32>,
    } else {
    }
    %c0 = arith.constant 0 : index
    %c0_1 = arith.constant 0 : index
    %3 = vector.load %arg2[%c0, %c0_1] : memref<8x128xf32, #tpu.memory_space<vmem>>, vector<8x128xf32>
    %4 = tpu.iota {dimensions = array<i32: 1>} : vector<8x128xi32>
    %c0_2 = arith.constant 0 : index
    %c0_3 = arith.constant 0 : index
    %5 = vector.load %arg3[%c0_2, %c0_3] : memref<8x1xi32, #tpu.memory_space<vmem>>, vector<8x1xi32>
    %c128_i32 = arith.constant 128 : i32
    %6 = arith.muli %arg1, %c128_i32 : i32
    %7 = vector.broadcast %6 : i32 to vector<8x1xi32>
    %8 = arith.subi %5, %7 : vector<8x1xi32>
    %9 = vector.broadcast %8 : vector<8x1xi32> to vector<8x128xi32>
    %10 = arith.cmpi eq, %4, %9 : vector<8x128xi32>
    %c0_4 = arith.constant 0 : index
    %c0_5 = arith.constant 0 : index
    %11 = vector.load %arg8[%c0_4, %c0_5] : memref<8x1xf32, #tpu.memory_space<vmem>>, vector<8x1xf32>
    %cst = arith.constant 0.000000e+00 : f32
    %12 = vector.broadcast %cst : f32 to vector<8x128xf32>
    %13 = arith.select %10, %3, %12 : vector<8x128xi1>, vector<8x128xf32>
    %cst_6 = arith.constant dense<0.000000e+00> : vector<8xf32>
    %14 = vector.multi_reduction <add>, %13, %cst_6 [1] : vector<8x128xf32> to vector<8xf32>
    %15 = vector.shape_cast %14 : vector<8xf32> to vector<8x1xf32>
    %16 = arith.addf %11, %15 : vector<8x1xf32>
    %c0_7 = arith.constant 0 : index
    %c0_8 = arith.constant 0 : index
    %17 = vector.load %arg8[%c0_7, %c0_8] : memref<8x1xf32, #tpu.memory_space<vmem>>, vector<8x1xf32>
    tpu.vector_store %arg8[%c0_7, %c0_8], %16 {strides = array<i32>} : memref<8x1xf32, #tpu.memory_space<vmem>>, vector<8x1xf32>,
    %c0_i32_9 = arith.constant 0 : i32
    %18 = arith.cmpi eq, %arg1, %c0_i32_9 : i32
    %19 = arith.extui %18 : i1 to i32
    %c0_i32_10 = arith.constant 0 : i32
    %20 = arith.cmpi ne, %19, %c0_i32_10 : i32
    scf.if %20 {
      %c128_i32_15 = arith.constant 128 : i32
      %27 = arith.muli %arg1, %c128_i32_15 : i32
      %c32_i32 = arith.constant 32 : i32
      %28 = arith.subi %c32_i32, %27 : i32
      %29 = vector.broadcast %28 : i32 to vector<8x128xi32>
      %30 = arith.cmpi slt, %4, %29 : vector<8x128xi32>
      %cst_16 = arith.constant 0xFF800000 : f32
      %31 = vector.broadcast %cst_16 : f32 to vector<8x128xf32>
      %32 = arith.select %30, %3, %31 : vector<8x128xi1>, vector<8x128xf32>
      %cst_17 = arith.constant 0.000000e+00 : f32
      %33 = vector.broadcast %cst_17 : f32 to vector<8x128xf32>
      %34 = arith.select %30, %3, %33 : vector<8x128xi1>, vector<8x128xf32>
      %c0_18 = arith.constant 0 : index
      %c0_19 = arith.constant 0 : index
      %35 = vector.load %arg5[%c0_18, %c0_19] : memref<8x1xf32, #tpu.memory_space<vmem>>, vector<8x1xf32>
      %cst_20 = arith.constant dense<0xFF800000> : vector<8xf32>
      %36 = vector.multi_reduction <maximumf>, %32, %cst_20 [1] : vector<8x128xf32> to vector<8xf32>
      %37 = vector.shape_cast %36 : vector<8xf32> to vector<8x1xf32>
      %38 = arith.maximumf %35, %37 : vector<8x1xf32>
      %39 = vector.broadcast %38 : vector<8x1xf32> to vector<8x128xf32>
      %40 = arith.subf %32, %39 : vector<8x128xf32>
      %41 = math.exp %40 : vector<8x128xf32>
      %c0_21 = arith.constant 0 : index
      %c0_22 = arith.constant 0 : index
      %42 = vector.load %arg6[%c0_21, %c0_22] : memref<8x1xf32, #tpu.memory_space<vmem>>, vector<8x1xf32>
      %43 = arith.subf %35, %38 : vector<8x1xf32>
      %44 = math.exp %43 : vector<8x1xf32>
      %45 = arith.mulf %42, %44 : vector<8x1xf32>
      %cst_23 = arith.constant dense<0.000000e+00> : vector<8xf32>
      %46 = vector.multi_reduction <add>, %41, %cst_23 [1] : vector<8x128xf32> to vector<8xf32>
      %47 = vector.shape_cast %46 : vector<8xf32> to vector<8x1xf32>
      %48 = arith.addf %45, %47 : vector<8x1xf32>
      %c0_24 = arith.constant 0 : index
      %c0_25 = arith.constant 0 : index
      %49 = vector.load %arg6[%c0_24, %c0_25] : memref<8x1xf32, #tpu.memory_space<vmem>>, vector<8x1xf32>
      tpu.vector_store %arg6[%c0_24, %c0_25], %48 {strides = array<i32>} : memref<8x1xf32, #tpu.memory_space<vmem>>, vector<8x1xf32>,
      %c0_26 = arith.constant 0 : index
      %c0_27 = arith.constant 0 : index
      %50 = vector.load %arg5[%c0_26, %c0_27] : memref<8x1xf32, #tpu.memory_space<vmem>>, vector<8x1xf32>
      tpu.vector_store %arg5[%c0_26, %c0_27], %38 {strides = array<i32>} : memref<8x1xf32, #tpu.memory_space<vmem>>, vector<8x1xf32>,
      %c0_28 = arith.constant 0 : index
      %c0_29 = arith.constant 0 : index
      %51 = vector.load %arg7[%c0_28, %c0_29] : memref<8x1xf32, #tpu.memory_space<vmem>>, vector<8x1xf32>
      %cst_30 = arith.constant dense<0.000000e+00> : vector<8xf32>
      %52 = vector.multi_reduction <add>, %34, %cst_30 [1] : vector<8x128xf32> to vector<8xf32>
      %53 = vector.shape_cast %52 : vector<8xf32> to vector<8x1xf32>
      %54 = arith.addf %51, %53 : vector<8x1xf32>
      %c0_31 = arith.constant 0 : index
      %c0_32 = arith.constant 0 : index
      %55 = vector.load %arg7[%c0_31, %c0_32] : memref<8x1xf32, #tpu.memory_space<vmem>>, vector<8x1xf32>
      tpu.vector_store %arg7[%c0_31, %c0_32], %54 {strides = array<i32>} : memref<8x1xf32, #tpu.memory_space<vmem>>, vector<8x1xf32>,
    } else {
    }
    %c0_i32_11 = arith.constant 0 : i32
    %21 = arith.cmpi ne, %arg1, %c0_i32_11 : i32
    %22 = arith.extui %21 : i1 to i32
    %c0_i32_12 = arith.constant 0 : i32
    %23 = arith.cmpi ne, %22, %c0_i32_12 : i32
    scf.if %23 {
      %c0_15 = arith.constant 0 : index
      %c0_16 = arith.constant 0 : index
      %27 = vector.load %arg5[%c0_15, %c0_16] : memref<8x1xf32, #tpu.memory_space<vmem>>, vector<8x1xf32>
      %cst_17 = arith.constant dense<0xFF800000> : vector<8xf32>
      %28 = vector.multi_reduction <maximumf>, %3, %cst_17 [1] : vector<8x128xf32> to vector<8xf32>
      %29 = vector.shape_cast %28 : vector<8xf32> to vector<8x1xf32>
      %30 = arith.maximumf %27, %29 : vector<8x1xf32>
      %31 = vector.broadcast %30 : vector<8x1xf32> to vector<8x128xf32>
      %32 = arith.subf %3, %31 : vector<8x128xf32>
      %33 = math.exp %32 : vector<8x128xf32>
      %c0_18 = arith.constant 0 : index
      %c0_19 = arith.constant 0 : index
      %34 = vector.load %arg6[%c0_18, %c0_19] : memref<8x1xf32, #tpu.memory_space<vmem>>, vector<8x1xf32>
      %35 = arith.subf %27, %30 : vector<8x1xf32>
      %36 = math.exp %35 : vector<8x1xf32>
      %37 = arith.mulf %34, %36 : vector<8x1xf32>
      %cst_20 = arith.constant dense<0.000000e+00> : vector<8xf32>
      %38 = vector.multi_reduction <add>, %33, %cst_20 [1] : vector<8x128xf32> to vector<8xf32>
      %39 = vector.shape_cast %38 : vector<8xf32> to vector<8x1xf32>
      %40 = arith.addf %37, %39 : vector<8x1xf32>
      %c0_21 = arith.constant 0 : index
      %c0_22 = arith.constant 0 : index
      %41 = vector.load %arg6[%c0_21, %c0_22] : memref<8x1xf32, #tpu.memory_space<vmem>>, vector<8x1xf32>
      tpu.vector_store %arg6[%c0_21, %c0_22], %40 {strides = array<i32>} : memref<8x1xf32, #tpu.memory_space<vmem>>, vector<8x1xf32>,
      %c0_23 = arith.constant 0 : index
      %c0_24 = arith.constant 0 : index
      %42 = vector.load %arg5[%c0_23, %c0_24] : memref<8x1xf32, #tpu.memory_space<vmem>>, vector<8x1xf32>
      tpu.vector_store %arg5[%c0_23, %c0_24], %30 {strides = array<i32>} : memref<8x1xf32, #tpu.memory_space<vmem>>, vector<8x1xf32>,
      %c0_25 = arith.constant 0 : index
      %c0_26 = arith.constant 0 : index
      %43 = vector.load %arg7[%c0_25, %c0_26] : memref<8x1xf32, #tpu.memory_space<vmem>>, vector<8x1xf32>
      %cst_27 = arith.constant dense<0.000000e+00> : vector<8xf32>
      %44 = vector.multi_reduction <add>, %3, %cst_27 [1] : vector<8x128xf32> to vector<8xf32>
      %45 = vector.shape_cast %44 : vector<8xf32> to vector<8x1xf32>
      %46 = arith.addf %43, %45 : vector<8x1xf32>
      %c0_28 = arith.constant 0 : index
      %c0_29 = arith.constant 0 : index
      %47 = vector.load %arg7[%c0_28, %c0_29] : memref<8x1xf32, #tpu.memory_space<vmem>>, vector<8x1xf32>
      tpu.vector_store %arg7[%c0_28, %c0_29], %46 {strides = array<i32>} : memref<8x1xf32, #tpu.memory_space<vmem>>, vector<8x1xf32>,
    } else {
    }
    %c0_i32_13 = arith.constant 0 : i32
    %24 = arith.cmpi eq, %arg1, %c0_i32_13 : i32
    %25 = arith.extui %24 : i1 to i32
    %c0_i32_14 = arith.constant 0 : i32
    %26 = arith.cmpi ne, %25, %c0_i32_14 : i32
    scf.if %26 {
      %c0_15 = arith.constant 0 : index
      %c0_16 = arith.constant 0 : index
      %27 = vector.load %arg5[%c0_15, %c0_16] : memref<8x1xf32, #tpu.memory_space<vmem>>, vector<8x1xf32>
      %c0_17 = arith.constant 0 : index
      %c0_18 = arith.constant 0 : index
      %28 = vector.load %arg6[%c0_17, %c0_18] : memref<8x1xf32, #tpu.memory_space<vmem>>, vector<8x1xf32>
      %29 = math.log %28 : vector<8x1xf32>
      %30 = arith.addf %27, %29 : vector<8x1xf32>
      %c0_19 = arith.constant 0 : index
      %c0_20 = arith.constant 0 : index
      %31 = vector.load %arg7[%c0_19, %c0_20] : memref<8x1xf32, #tpu.memory_space<vmem>>, vector<8x1xf32>
      %cst_21 = arith.constant 3.200000e+01 : f32
      %32 = vector.broadcast %cst_21 : f32 to vector<8x1xf32>
      %33 = arith.mulf %32, %30 : vector<8x1xf32>
      %34 = arith.subf %31, %33 : vector<8x1xf32>
      %c0_22 = arith.constant 0 : index
      %c0_23 = arith.constant 0 : index
      %35 = vector.load %arg8[%c0_22, %c0_23] : memref<8x1xf32, #tpu.memory_space<vmem>>, vector<8x1xf32>
      %36 = arith.subf %35, %30 : vector<8x1xf32>
      %cst_24 = arith.constant 0.0032258064 : f32
      %37 = vector.broadcast %cst_24 : f32 to vector<8x1xf32>
      %38 = arith.mulf %37, %34 : vector<8x1xf32>
      %cst_25 = arith.constant 0.896774172 : f32
      %39 = vector.broadcast %cst_25 : f32 to vector<8x1xf32>
      %40 = arith.mulf %39, %36 : vector<8x1xf32>
      %41 = arith.addf %38, %40 : vector<8x1xf32>
      %cst_26 = arith.constant 0.000000e+00 : f32
      %42 = vector.broadcast %cst_26 : f32 to vector<8x1xf32>
      %43 = arith.subf %42, %41 : vector<8x1xf32>
      %c0_27 = arith.constant 0 : index
      %c0_28 = arith.constant 0 : index
      %44 = vector.load %arg4[%c0_27, %c0_28] : memref<8x1xf32, #tpu.memory_space<vmem>>, vector<8x1xf32>
      tpu.vector_store %arg4[%c0_27, %c0_28], %43 {strides = array<i32>} : memref<8x1xf32, #tpu.memory_space<vmem>>, vector<8x1xf32>,
    } else {
    }
    return
  }
  func.func @transform_0(%arg0: i32, %arg1: i32) -> (i32, i32) {
    %c0_i32 = arith.constant 0 : i32
    return %arg0, %arg1 : i32, i32
  }
  func.func @transform_1(%arg0: i32, %arg1: i32) -> (i32, i32) {
    %c0_i32 = arith.constant 0 : i32
    %c0_i32_0 = arith.constant 0 : i32
    return %arg0, %c0_i32 : i32, i32
  }
  func.func @transform_2(%arg0: i32, %arg1: i32) -> (i32, i32) {
    %c0_i32 = arith.constant 0 : i32
    %c0_i32_0 = arith.constant 0 : i32
    return %arg0, %c0_i32 : i32, i32
  }
}

</mosaic_0001>

<llo_original>
// kernel: tpu_custom_call.1
$region0: #{tpu_custom_call.1}
  #allocation0 [shape = 'u32[]', space=smem, size = 0x4, offset = 0x4, fixed_abs, tag = 'smem constant byte address 0x4 - core index']
  #allocation1 [shape = 'u32[144,128]{1,0:T(1,128)}', space=vmem, size = 0x12000, scoped, tag = 'internal scratch']
  #allocation2 [shape = 'f32[8,1]{1,0:T(8,128)}', space=vmem, size = 0x1000, scoped, tag = 'scratch operand']
  #allocation3 [shape = 'f32[8,1]{1,0:T(8,128)}', space=vmem, size = 0x1000, scoped, tag = 'scratch operand']
  #allocation4 [shape = 'f32[8,1]{1,0:T(8,128)}', space=vmem, size = 0x1000, scoped, tag = 'scratch operand']
  #allocation5 [shape = 'f32[8,1]{1,0:T(8,128)}', space=vmem, size = 0x1000, scoped, tag = 'scratch operand']
  %s0 = inlined_call_operand.vmem [shape: f32[8,32], index: 0, kind: input, shape index: {}]
  %s1 = inlined_call_operand.vmem [shape: s32[8,1], index: 1, kind: input, shape index: {}]
  %s2 = inlined_call_operand.vmem [shape: f32[8,1], index: 2, kind: output, shape index: {}]
  %s3 = sld [smem:[#allocation0]]
  $region34: #{tpu_custom_call.1} parent=0
    _
  %s5 = ssub.s32 1, %s3
  %s6 = scalar_select 0, %s5, %s3
  // Predicated region
  $region2: #{tpu_custom_call.1} parent=0 // pred_check
    _
  $region3: #{tpu_custom_call.1} parent=0 // pred_check_branch
    %8 = sbr.rel (0) target = $region5
  $region4: #{tpu_custom_call.1} parent=0 // pred_region
    _
  $region5: #{tpu_custom_call.1} parent=0 // pred_fallthru
    _
  // Predicated region
  $region6: #{tpu_custom_call.1} parent=0 // pred_check
    _
  $region7: #{tpu_custom_call.1} parent=0 // pred_check_branch
    %10 = sbr.rel (0) target = $region9
  $region8: #{tpu_custom_call.1} parent=0 // pred_region
    _
  $region9: #{tpu_custom_call.1} parent=0 // pred_fallthru
    _
  %p11 = scmp.eq.s32.totalorder 0, 0
  // Predicated region
  $region10: #{tpu_custom_call.1} parent=0 // pred_check
    %p12 = pneg %p11
  $region11: #{tpu_custom_call.1} parent=0 // pred_check_branch
    %14 = sbr.rel (%p12) target = $region13
  $region12: #{tpu_custom_call.1} parent=0 // pred_region
    %vm15 = vcmask 7168
    %16 = vst.msk [vmem:[#allocation2] sm:$0xff] %vm15, -inf
    %17 = vst.msk [vmem:[#allocation3] sm:$0xff] %vm15, 0.0
    %18 = vst.msk [vmem:[#allocation4] sm:$0xff] %vm15, 0.0
    %19 = vst.msk [vmem:[#allocation5] sm:$0xff] %vm15, 0.0
  $region13: #{tpu_custom_call.1} parent=0 // pred_fallthru
    _
  %v20 = vld [vmem:[%s0] sm:$0xff]
  %v21 = vlaneseq
  %v22 = vand.u32 %v21, 127
  %v23 = vld [vmem:[%s1] sm:$0xff]
  %s24 = smul.u32 0, 128
  %v25 = vstv %s24
  %v26 = vsub.s32 %v23, %v25
  %27 = vset.pattern.permute.xlu0 0
  %28 = vperm.xlu0 %27, %v26
  %v29 = vpop.permute.xlu0 %28
  %vm30 = vcmp.eq.s32.totalorder %v22, %v29
  %v31 = vld [vmem:[#allocation5] sm:$0xff]
  %v32 = vsel %vm30, %v20, 0.0
  %33 = vadd.xlane.f32.xlu0 %v32
  %v34 = vpop.xlane.xlu0 %33
  %v35 = vadd.f32 %v31, %v34
  %vm36 = vcmask 7168
  %37 = vst.msk [vmem:[#allocation5] sm:$0xff] %vm36, %v35
  // Predicated region
  $region14: #{tpu_custom_call.1} parent=0 // pred_check
    %p38 = pneg %p11
  $region15: #{tpu_custom_call.1} parent=0 // pred_check_branch
    %40 = sbr.rel (%p38) target = $region17
  $region16: #{tpu_custom_call.1} parent=0 // pred_region
    %s41 = ssub.s32 32, %s24
    %v42 = vstv %s41
    %vm43 = vcmp.lt.s32.totalorder %v22, %v42
    %v44 = vsel %vm43, %v20, -inf
    %v45 = vsel %vm43, %v20, 0.0
    %v46 = vld [vmem:[#allocation2] sm:$0xff]
    %47 = vmax.xlane.f32.xlu0 %v44
    %v48 = vpop.xlane.xlu0 %47
    %v49 = vmax.f32 %v46, %v48
    %51 = vset.pattern.permute.xlu0 0
    %52 = vperm.xlu0 %51, %v49
    %v53 = vpop.permute.xlu0 %52
    %v55 = vsub.f32 %v44, %v53
    %v56 = vmul.f32 %v55, 1.442695
    %v57 = vpow.pop %v56
    %v58 = vld [vmem:[#allocation3] sm:$0xff]
    %v59 = vsub.f32 %v46, %v49
    %v60 = vmul.f32 %v59, 1.442695
    %v61 = vpow.pop %v60
    %v62 = vmul.f32 %v58, %v61
    %63 = vadd.xlane.f32.xlu0 %v57
    %v64 = vpop.xlane.xlu0 %63
    %v65 = vadd.f32 %v62, %v64
    %66 = vst.msk [vmem:[#allocation3] sm:$0xff] %vm36, %v65
    %67 = vst.msk [vmem:[#allocation2] sm:$0xff] %vm36, %v49
    %v68 = vld [vmem:[#allocation4] sm:$0xff]
    %69 = vadd.xlane.f32.xlu0 %v45
    %v70 = vpop.xlane.xlu0 %69
    %v71 = vadd.f32 %v68, %v70
    %72 = vst.msk [vmem:[#allocation4] sm:$0xff] %vm36, %v71
  $region17: #{tpu_custom_call.1} parent=0 // pred_fallthru
    _
  %p73 = scmp.ne.s32.totalorder 0, 0
  // Predicated region
  $region18: #{tpu_custom_call.1} parent=0 // pred_check
    %p74 = pneg %p73
  $region19: #{tpu_custom_call.1} parent=0 // pred_check_branch
    %76 = sbr.rel (%p74) target = $region21
  $region20: #{tpu_custom_call.1} parent=0 // pred_region
    %v77 = vld [vmem:[#allocation2] sm:$0xff]
    %78 = vmax.xlane.f32.xlu0 %v20
    %v79 = vpop.xlane.xlu0 %78
    %v80 = vmax.f32 %v77, %v79
    %82 = vset.pattern.permute.xlu0 0
    %83 = vperm.xlu0 %82, %v80
    %v84 = vpop.permute.xlu0 %83
    %v86 = vsub.f32 %v20, %v84
    %v87 = vmul.f32 %v86, 1.442695
    %v88 = vpow.pop %v87
    %v89 = vld [vmem:[#allocation3] sm:$0xff]
    %v90 = vsub.f32 %v77, %v80
    %v91 = vmul.f32 %v90, 1.442695
    %v92 = vpow.pop %v91
    %v93 = vmul.f32 %v89, %v92
    %94 = vadd.xlane.f32.xlu0 %v88
    %v95 = vpop.xlane.xlu0 %94
    %v96 = vadd.f32 %v93, %v95
    %97 = vst.msk [vmem:[#allocation3] sm:$0xff] %vm36, %v96
    %98 = vst.msk [vmem:[#allocation2] sm:$0xff] %vm36, %v80
    %v99 = vld [vmem:[#allocation4] sm:$0xff]
    %100 = vadd.xlane.f32.xlu0 %v20
    %v101 = vpop.xlane.xlu0 %100
    %v102 = vadd.f32 %v99, %v101
    %103 = vst.msk [vmem:[#allocation4] sm:$0xff] %vm36, %v102
  $region21: #{tpu_custom_call.1} parent=0 // pred_fallthru
    _
  // Predicated region
  $region22: #{tpu_custom_call.1} parent=0 // pred_check
    %p104 = pneg %p11
  $region23: #{tpu_custom_call.1} parent=0 // pred_check_branch
    %106 = sbr.rel (%p104) target = $region25
  $region24: #{tpu_custom_call.1} parent=0 // pred_region
    %v107 = vld [vmem:[#allocation2] sm:$0xff]
    %v108 = vld [vmem:[#allocation3] sm:$0xff]
    %v109 = vlog2.pop %v108
    %v110 = vmul.f32 %v109, 0.6931472
    %v111 = vadd.f32 %v107, %v110
    %v112 = vld [vmem:[#allocation4] sm:$0xff]
    %v113 = vmul.f32 %v111, 32.0
    %v114 = vsub.f32 %v112, %v113
    %v115 = vld [vmem:[#allocation5] sm:$0xff]
    %v116 = vsub.f32 %v115, %v111
    %v117 = vmul.f32 %v114, 0.0032258064
    %v118 = vmul.f32 %v116, 0.8967742
    %v119 = vadd.f32 %v117, %v118
    %v120 = vsub.f32 0.0, %v119
    %121 = vst.msk [vmem:[%s2] sm:$0xff] %vm36, %v120
  $region25: #{tpu_custom_call.1} parent=0 // pred_fallthru
    _
  // Predicated region
  $region26: #{tpu_custom_call.1} parent=0 // pred_check
    _
  $region27: #{tpu_custom_call.1} parent=0 // pred_check_branch
    %123 = sbr.rel (0) target = $region29
  $region28: #{tpu_custom_call.1} parent=0 // pred_region
    _
  $region29: #{tpu_custom_call.1} parent=0 // pred_fallthru
    _
  // Predicated region
  $region30: #{tpu_custom_call.1} parent=0 // pred_check
    _
  $region31: #{tpu_custom_call.1} parent=0 // pred_check_branch
    %125 = sbr.rel (0) target = $region33
  $region32: #{tpu_custom_call.1} parent=0 // pred_region
    _
  $region33: #{tpu_custom_call.1} parent=0 // pred_fallthru
    _

</llo_original>
